<compile_context>
chip_gen: v6e
topology: v6e:2x2x1
jax: 0.10.0
libtpu: 0.0.40
codegen_flags: <defaults>
</compile_context>

<pallas_src>
import functools

import jax
import jax.numpy as jnp
from jax.experimental import pallas as pl
from jax.experimental.pallas import tpu as pltpu


_HEADROOM = 8 << 20        # VMEM slack for compiler-internal scratch
_TARGET_TILE = 8 << 20     # per-grid-step input-tile size target


def _round_up(x, m):
    return (x + m - 1) // m * m


def _min_sublane(itemsize):
    # Minimal sublane tile per dtype: 8 (f32), 16 (bf16), 32 (int8/fp8).
    return 8 * max(1, 4 // max(itemsize, 1))


def _vmem_budget():
    """(fit budget, physical cap) per TensorCore, generation-aware."""
    cap = 64 << 20  # conservative default (v7x per-TC VMEM)
    try:
        info = pltpu.get_tpu_info()
        cap = int(info.vmem_capacity_bytes) or cap
    except Exception:  # query unavailable -> conservative default
        pass
    budget = max(cap - (16 << 20), 32 << 20)
    return budget, cap


# ----------------------------------------------------------------------------
# Path A: resident -- whole (bt, C, HW) slab per grid step.
# ----------------------------------------------------------------------------
def _resident_kernel(x_ref, o_ref, *, inv_scale):
    # x_ref: (bt, C, HW) input dtype; o_ref: (bt, 1, HW).
    bt, C, HW = x_ref.shape
    for b in range(bt):
        acc = jnp.zeros((1, HW), jnp.float32)
        for c0 in range(0, C, 8):
            cn = min(8, C - c0)
            # Stream 8 channels at a time: only one (cn, HW) f32 chunk plus
            # the (1, HW) f32 accumulator live in VMEM, never a full-tile
            # f32 copy of x or a full-tile x*rowsum temporary.
            xc = x_ref[b, c0:c0 + cn, :].astype(jnp.float32)      # (cn, HW)
            s = jnp.sum(xc, axis=-1, keepdims=True)               # (cn, 1)
            acc = acc + jnp.sum(xc * s, axis=0, keepdims=True)    # (1, HW)
        o_ref[b] = (acc * inv_scale).astype(o_ref.dtype)


def _resident_footprint(bt, C, HW, ds):
    sub = _min_sublane(ds)
    hw_l = _round_up(HW, 128)
    in_buf = bt * _round_up(C, sub) * hw_l * ds        # (bt, C, HW) VMEM tile
    out_buf = bt * sub * hw_l * ds                     # (bt, 1, HW), sublane-padded
    inter = 6 * 8 * hw_l * 4                           # f32 chunk temps + acc
    return 2 * in_buf + 2 * out_buf + inter + _HEADROOM


def _pick_batch_tile(B, C, HW, ds, budget):
    img = C * HW * ds
    divs = [d for d in range(1, B + 1)
            if B % d == 0
            and _resident_footprint(d, C, HW, ds) <= budget
            and d * ((C + 7) // 8) <= 256]             # bound in-kernel unroll
    if not divs:
        return 0
    under = [d for d in divs if d * img <= _TARGET_TILE] or [divs[0]]
    best = max(under)
    # Prefer an even (>= 2) number of grid steps (v7x megacore balance +
    # pipeline overlap) when it does not shrink the tile by more than 2x.
    for d in sorted(under, reverse=True):
        steps = B // d
        if steps >= 2 and steps % 2 == 0 and 2 * d >= best:
            best = d
            break
    return best


def _weak_saliency_resident(x2, bt, inv_scale, vmem_cap):
    B, C, HW = x2.shape
    ds = x2.dtype.itemsize
    fp = _resident_footprint(bt, C, HW, ds)
    vmem_limit = int(min(max(fp, 32 << 20), vmem_cap))
    return pl.pallas_call(
        functools.partial(_resident_kernel, inv_scale=inv_scale),
        out_shape=jax.ShapeDtypeStruct((B, 1, HW), x2.dtype),
        grid_spec=pltpu.PrefetchScalarGridSpec(
            num_scalar_prefetch=0,
            grid=(B // bt,),
            in_specs=[pl.BlockSpec((bt, C, HW), lambda i: (i, 0, 0))],
            out_specs=pl.BlockSpec((bt, 1, HW), lambda i: (i, 0, 0)),
        ),
        compiler_params=pltpu.CompilerParams(
            dimension_semantics=("parallel",),
            vmem_limit_bytes=vmem_limit,
        ),
    )(x2)


# ----------------------------------------------------------------------------
# Path B: single-pass channel-tiled stream (one HBM read of x).
# ----------------------------------------------------------------------------
def _channel_stream_kernel(x_ref, o_ref, acc_ref, *, C, Ct, inv_scale):
    # x_ref: (Ct, HW); o_ref: (1, HW); acc_ref: (1, HW) f32 scratch, resident
    # across the channel grid axis.
    c_blk = pl.program_id(1)

    @pl.when(c_blk == 0)
    def _():
        acc_ref[...] = jnp.zeros_like(acc_ref)

    ragged = (C % Ct) != 0
    acc = acc_ref[...]
    for c0 in range(0, Ct, 8):
        cn = min(8, Ct - c0)
        xc = x_ref[c0:c0 + cn, :].astype(jnp.float32)             # (cn, HW)
        if ragged:
            gc = (c_blk * Ct + c0
                  + jax.lax.broadcasted_iota(jnp.int32, (cn, 1), 0))
            xc = jnp.where(gc < C, xc, 0.0)          # zero out-of-range channels
        s = jnp.sum(xc, axis=-1, keepdims=True)                   # (cn, 1)
        acc = acc + jnp.sum(xc * s, axis=0, keepdims=True)        # (1, HW)
    acc_ref[...] = acc

    @pl.when(c_blk == pl.num_programs(1) - 1)
    def _():
        o_ref[...] = (acc * inv_scale).astype(o_ref.dtype)


def _channel_footprint(ct, HW, ds):
    sub = _min_sublane(ds)
    hw_l = _round_up(HW, 128)
    in_buf = _round_up(ct, sub) * hw_l * ds
    out_buf = sub * hw_l * ds
    acc = 8 * hw_l * 4
    inter = 4 * 8 * hw_l * 4
    return 2 * in_buf + 2 * out_buf + acc + inter + _HEADROOM


def _pick_channel_tile(C, HW, ds, budget):
    if C <= 8:
        return C if _channel_footprint(C, HW, ds) <= budget else 0
    cands = [ct for ct in range(8, min((C // 8) * 8, 256) + 1, 8)
             if _channel_footprint(ct, HW, ds) <= budget]
    if not cands:
        return 0
    under = [ct for ct in cands if ct * HW * ds <= _TARGET_TILE] or [cands[0]]
    return max(under)


def _weak_saliency_channel(x2, ct, inv_scale, vmem_cap):
    B, C, HW = x2.shape
    ds = x2.dtype.itemsize
    fp = _channel_footprint(ct, HW, ds)
    vmem_limit = int(min(max(fp, 32 << 20), vmem_cap))
    n_c = pl.cdiv(C, ct)
    return pl.pallas_call(
        functools.partial(_channel_stream_kernel, C=C, Ct=ct,
                          inv_scale=inv_scale),
        out_shape=jax.ShapeDtypeStruct((B, 1, HW), x2.dtype),
        grid_spec=pltpu.PrefetchScalarGridSpec(
            num_scalar_prefetch=0,
            grid=(B, n_c),
            in_specs=[pl.BlockSpec((None, ct, HW), lambda b, c: (b, c, 0))],
            out_specs=pl.BlockSpec((None, 1, HW), lambda b, c: (b, 0, 0)),
            scratch_shapes=[pltpu.VMEM((1, HW), jnp.float32)],
        ),
        compiler_params=pltpu.CompilerParams(
            dimension_semantics=("parallel", "arbitrary"),
            vmem_limit_bytes=vmem_limit,
        ),
    )(x2)


# ----------------------------------------------------------------------------
# Path C: two-pass spatially-tiled last resort (single channel row > VMEM).
# ----------------------------------------------------------------------------
def _spatial_sum_kernel(x_ref, s_ref, *, HW, T):
    # Pass 1: per-channel spatial sums.  x_ref: (C, T); s_ref: (C, 1) f32,
    # resident across the spatial grid axis.
    t = pl.program_id(1)

    @pl.when(t == 0)
    def _():
        s_ref[...] = jnp.zeros_like(s_ref)

    x = x_ref[...].astype(jnp.float32)
    if HW % T != 0:
        col = t * T + jax.lax.broadcasted_iota(jnp.int32, x.shape, 1)
        x = jnp.where(col < HW, x, 0.0)               # mask the ragged last tile
    s_ref[...] += jnp.sum(x, axis=-1, keepdims=True)


def _spatial_apply_kernel(x_ref, s_ref, o_ref, *, inv_scale):
    # Pass 2: weighted channel sum per spatial tile.  x_ref: (C, T);
    # s_ref: (C, 1) f32; o_ref: (1, T).  OOB columns of the ragged last tile
    # are dropped by the masked writeback, so no masking is needed here.
    C, T = x_ref.shape
    acc = jnp.zeros((1, T), jnp.float32)
    for c0 in range(0, C, 8):
        cn = min(8, C - c0)
        xc = x_ref[c0:c0 + cn, :].astype(jnp.float32)
        acc = acc + jnp.sum(xc * s_ref[c0:c0 + cn, :], axis=0, keepdims=True)
    o_ref[...] = (acc * inv_scale).astype(o_ref.dtype)


def _pick_spatial_tile(C, HW, ds, budget):
    sub = _min_sublane(ds)
    c_in = _round_up(C, sub)
    c_f32 = _round_up(C, 8)
    per_col = 2 * c_in * ds + 2 * c_f32 * 4 + 2 * 8 * ds
    fixed = 2 * c_f32 * 128 * 4 + _HEADROOM
    T = (budget - fixed) // max(per_col, 1)
    T = max(128, (T // 128) * 128)
    return HW if T >= HW else T


def _weak_saliency_spatial(x2, inv_scale, budget, vmem_cap, tile=None):
    B, C, HW = x2.shape
    ds = x2.dtype.itemsize
    T = tile if tile is not None else _pick_spatial_tile(C, HW, ds, budget)
    T = min(T, HW)
    n_t = pl.cdiv(HW, T)
    sub = _min_sublane(ds)
    fp = (2 * _round_up(C, sub) * _round_up(T, 128) * ds
          + 3 * _round_up(C, 8) * _round_up(T, 128) * 4
          + 2 * _round_up(C, 8) * 128 * 4
          + 2 * 8 * _round_up(T, 128) * ds + _HEADROOM)
    vmem_limit = int(min(max(fp, 32 << 20), vmem_cap))

    # Pass 1: per-(batch, channel) spatial sums, f32-accumulated across tiles.
    chan_sums = pl.pallas_call(
        functools.partial(_spatial_sum_kernel, HW=HW, T=T),
        out_shape=jax.ShapeDtypeStruct((B, C, 1), jnp.float32),
        grid_spec=pltpu.PrefetchScalarGridSpec(
            num_scalar_prefetch=0,
            grid=(B, n_t),
            in_specs=[pl.BlockSpec((None, C, T), lambda b, t: (b, 0, t))],
            out_specs=pl.BlockSpec((None, C, 1), lambda b, t: (b, 0, 0)),
        ),
        compiler_params=pltpu.CompilerParams(
            dimension_semantics=("parallel", "arbitrary"),
            vmem_limit_bytes=vmem_limit,
        ),
    )(x2)

    # Pass 2: weighted channel sum, tile by tile (second HBM read of x; only
    # reached when a single channel row cannot fit VMEM).
    out = pl.pallas_call(
        functools.partial(_spatial_apply_kernel, inv_scale=inv_scale),
        out_shape=jax.ShapeDtypeStruct((B, 1, HW), x2.dtype),
        grid_spec=pltpu.PrefetchScalarGridSpec(
            num_scalar_prefetch=0,
            grid=(B, n_t),
            in_specs=[
                pl.BlockSpec((None, C, T), lambda b, t: (b, 0, t)),
                pl.BlockSpec((None, C, 1), lambda b, t: (b, 0, 0)),
            ],
            out_specs=pl.BlockSpec((None, 1, T), lambda b, t: (b, 0, t)),
        ),
        compiler_params=pltpu.CompilerParams(
            dimension_semantics=("parallel", "parallel"),
            vmem_limit_bytes=vmem_limit,
        ),
    )(x2, chan_sums)
    return out


# ----------------------------------------------------------------------------
# Public wrapper
# ----------------------------------------------------------------------------
def weak_saliency(x, *, force_path=None, spatial_tile=None):
    """x: (B, C, H, W) float array -> (B, 1, H, W).

    force_path in {None, "resident", "channel", "spatial"} and spatial_tile
    are testing hooks only; dispatch is automatic otherwise.
    """
    B, C, H, W = x.shape
    HW = H * W
    ds = x.dtype.itemsize
    inv_scale = 1.0 / (C * H * W)
    x2 = x.reshape(B, C, HW)          # lane dim becomes H*W (lane-dense)
    budget, cap = _vmem_budget()

    path = force_path
    bt = ct = 0
    if path in (None, "resident"):
        bt = _pick_batch_tile(B, C, HW, ds, budget)
        if path is None and bt:
            path = "resident"
    if path in (None, "channel"):
        ct = _pick_channel_tile(C, HW, ds, budget)
        if path is None and ct:
            path = "channel"
    if path is None:
        path = "spatial"

    if path == "resident":
        if not bt:
            raise ValueError("resident path does not fit VMEM for this shape")
        out2 = _weak_saliency_resident(x2, bt, inv_scale, cap)
    elif path == "channel":
        if not ct:
            raise ValueError("channel path does not fit VMEM for this shape")
        out2 = _weak_saliency_channel(x2, ct, inv_scale, cap)
    elif path == "spatial":
        out2 = _weak_saliency_spatial(x2, inv_scale, budget, cap,
                                      tile=spatial_tile)
    else:
        raise ValueError(f"unknown path {path!r}")

    return out2.reshape(B, 1, H, W)


def weak_saliency_ref(x):
    """Pure-JAX reference mirroring the PyTorch forward."""
    C = x.shape[1]
    alpha = jnp.mean(x, axis=(2, 3), keepdims=True)       # (B, C, 1, 1)
    return jnp.sum(x * alpha, axis=1, keepdims=True) / C  # (B, 1, H, W)


if __name__ == "__main__":
    key = jax.random.PRNGKey(0)
    # Small deterministic shapes; the 2nd/3rd exercise the ragged-spatial and
    # ragged-channel masking of the fallback paths.
    shapes = [(2, 4, 16, 16), (2, 3, 12, 12), (2, 12, 8, 16)]
    for i, shape in enumerate(shapes):
        x = jax.random.normal(jax.random.fold_in(key, i), shape,
                              dtype=jnp.float32)
        ref = weak_saliency_ref(x)

        # Default dispatch (resident path at these sizes).
        out = jax.block_until_ready(weak_saliency(x))
        assert out.shape == ref.shape, (shape, out.shape)
        assert jnp.allclose(out, ref, atol=1e-5, rtol=1e-5), ("resident", shape)

        # Single-pass channel-tiled fallback.
        out = jax.block_until_ready(weak_saliency(x, force_path="channel"))
        assert jnp.allclose(out, ref, atol=1e-5, rtol=1e-5), ("channel", shape)

        # Two-pass spatially-tiled last resort (tile forced to 128 so the
        # ragged-tile masking is exercised where H*W is not a multiple of 128).
        out = jax.block_until_ready(
            weak_saliency(x, force_path="spatial", spatial_tile=128))
        assert jnp.allclose(out, ref, atol=1e-5, rtol=1e-5), ("spatial", shape)

    print("KERNEL_OK")
</pallas_src>

<mosaic_0001>
module attributes {stable_mosaic.version = 11 : i64} {
  func.func @_resident_kernel(%arg0: i32, %arg1: memref<1x4x256xf32, #tpu.memory_space<vmem>>, %arg2: memref<1x1x256xf32, #tpu.memory_space<vmem>>) attributes {dimension_semantics = [#tpu.dimension_semantics<parallel>], iteration_bounds = array<i64: 2>, scalar_prefetch = 0 : i64, scratch_operands = 0 : i64, tpu.core_type = #tpu.core_type<tc>, window_params = [{transform_indices = @transform_0, window_bounds = array<i64: 1, 4, 256>}, {transform_indices = @transform_1, window_bounds = array<i64: 1, 1, 256>}]} {
    %cst = arith.constant 0.000000e+00 : f32
    %0 = vector.broadcast %cst : f32 to vector<1x256xf32>
    %c0 = arith.constant 0 : index
    %c0_0 = arith.constant 0 : index
    %c0_1 = arith.constant 0 : index
    %1 = vector.load %arg1[%c0, %c0_0, %c0_1] : memref<1x4x256xf32, #tpu.memory_space<vmem>>, vector<1x4x256xf32>
    %2 = vector.shape_cast %1 : vector<1x4x256xf32> to vector<4x256xf32>
    %cst_2 = arith.constant dense<0.000000e+00> : vector<4xf32>
    %3 = vector.multi_reduction <add>, %2, %cst_2 [1] : vector<4x256xf32> to vector<4xf32>
    %4 = vector.shape_cast %3 : vector<4xf32> to vector<4x1xf32>
    %5 = vector.broadcast %4 : vector<4x1xf32> to vector<4x256xf32>
    %6 = arith.mulf %2, %5 : vector<4x256xf32>
    %cst_3 = arith.constant dense<0.000000e+00> : vector<256xf32>
    %7 = vector.multi_reduction <add>, %6, %cst_3 [0] : vector<4x256xf32> to vector<256xf32>
    %8 = vector.shape_cast %7 : vector<256xf32> to vector<1x256xf32>
    %9 = arith.addf %0, %8 : vector<1x256xf32>
    %cst_4 = arith.constant 9.765625E-4 : f32
    %10 = vector.broadcast %cst_4 : f32 to vector<1x256xf32>
    %11 = arith.mulf %9, %10 : vector<1x256xf32>
    %c0_5 = arith.constant 0 : index
    %c0_6 = arith.constant 0 : index
    %c0_7 = arith.constant 0 : index
    %12 = vector.load %arg2[%c0_5, %c0_6, %c0_7] : memref<1x1x256xf32, #tpu.memory_space<vmem>>, vector<1x1x256xf32>
    %13 = vector.shape_cast %12 : vector<1x1x256xf32> to vector<1x256xf32>
    %14 = vector.shape_cast %11 : vector<1x256xf32> to vector<1x1x256xf32>
    tpu.vector_store %arg2[%c0_5, %c0_6, %c0_7], %14 {strides = array<i32>} : memref<1x1x256xf32, #tpu.memory_space<vmem>>, vector<1x1x256xf32>,
    return
  }
  func.func @transform_0(%arg0: i32) -> (i32, i32, i32) {
    %c0_i32 = arith.constant 0 : i32
    %c0_i32_0 = arith.constant 0 : i32
    %c0_i32_1 = arith.constant 0 : i32
    return %arg0, %c0_i32, %c0_i32_0 : i32, i32, i32
  }
  func.func @transform_1(%arg0: i32) -> (i32, i32, i32) {
    %c0_i32 = arith.constant 0 : i32
    %c0_i32_0 = arith.constant 0 : i32
    %c0_i32_1 = arith.constant 0 : i32
    return %arg0, %c0_i32, %c0_i32_0 : i32, i32, i32
  }
}

</mosaic_0001>

<llo_original>
// kernel: tpu_custom_call.1
$region0: #{tpu_custom_call.1}
  #allocation0 [shape = 'u32[]', space=smem, size = 0x4, offset = 0x4, fixed_abs, tag = 'smem constant byte address 0x4 - core index']
  #allocation1 [shape = 'u32[144,128]{1,0:T(1,128)}', space=vmem, size = 0x12000, scoped, tag = 'internal scratch']
  %s0 = inlined_call_operand.hbm [shape: f32[2,4,256], index: 0, kind: input, shape index: {}]
  %s1 = inlined_call_operand.hbm [shape: f32[2,1,256], index: 1, kind: output, shape index: {}]
  %s2 = sld [smem:[#allocation0]]
  $region41: #{tpu_custom_call.1} parent=0
    _
  %s4 = ssub.s32 1, %s2
  %s5 = scalar_select 0, %s4, %s2
  $region1: #{tpu_custom_call.1} parent=0
    #allocation2 [shape = 'u8[8192]{0}', space=vmem, size = 0x2000, scoped, tag = 'input window, operand 0']
    #allocation3 [shape = 's32[2]{0}', space=sflag, size = 0x8, scoped, tag = 'scoped memory for tpu_custom_call.1']
    #allocation4 [shape = 's32[2]{0}', space=sflag, size = 0x8, scoped, tag = 'scoped memory for tpu_custom_call.1']
    #allocation5 [shape = 'u8[2048]{0}', space=vmem, size = 0x800, scoped, tag = 'output window, operand 0']
    %6 = vsyncpa [#allocation3], 0
    %s7 = scalar_lea.sflag [#allocation3], 1
    %8 = vsyncpa %s7, 0
    %9 = vsyncpa [#allocation4], 0
    %s10 = scalar_lea.sflag [#allocation4], 1
    %11 = vsyncpa %s10, 0
    loop: start=0, step=1, limit=4
    $region2: #{tpu_custom_call.1} parent=1 // loop_pre_header
      _
    $region3: #{tpu_custom_call.1} parent=1 // loop_header
      %s13 = sphi 0, %s17
      %p14 = scmp.ge.s32.totalorder %s13, 4
      %s23 = sphi 0, %s25
      %s26 = sphi 0, %s23
      %s27 = sphi 0, %s26
      %s43 = sphi 0, %s27
      %s49 = sphi 0, %s51
      %s52 = sphi 0, %s49
      %s53 = sphi 0, %s52
      %s69 = sphi 0, %s53
    $region4: #{tpu_custom_call.1} parent=1 // loop_header_branch
      %16 = sbr.rel (%p14) target = $region8
    $region5: #{tpu_custom_call.1} parent=1 // loop_body
      %s18 = ssub.s32 %s13, 1
      %s19 = ssub.s32 %s13, 2
      %s20 = sadd.s32 %s13, 1
      %s21 = ssub.s32 %s13, %s20
      %p22 = scmp.eq.s32.totalorder %s21, 0
      %s24 = sadd.s32 %s23, 1
      %s25 = scalar_select %p22, %s23, %s24
      %p28 = pneg %p22
      %p29 = scmp.eq.s32.totalorder %s13, 1
      %p30 = por %p28, %p29
      %p31 = scmp.ne.s32.totalorder %s23, %s26
      %p32 = scmp.eq.s32.totalorder %s13, 0
      %p33 = por %p31, %p32
      %p34 = scmp.ne.s32.totalorder %s23, %s26
      %p35 = scmp.eq.s32.totalorder %s18, 1
      %p36 = por %p34, %p35
      %p37 = scmp.ne.s32.totalorder %s26, %s27
      %p38 = scmp.eq.s32.totalorder %s18, 0
      %p39 = por %p37, %p38
      %p40 = scmp.ne.s32.totalorder %s26, %s27
      %p41 = scmp.eq.s32.totalorder %s19, 1
      %p42 = por %p40, %p41
      %p44 = scmp.ne.s32.totalorder %s27, %s43
      %p45 = scmp.eq.s32.totalorder %s19, 0
      %p46 = por %p44, %p45
      %s47 = ssub.s32 %s13, %s20
      %p48 = scmp.eq.s32.totalorder %s47, 0
      %s50 = sadd.s32 %s49, 1
      %s51 = scalar_select %p48, %s49, %s50
      %p54 = pneg %p48
      %p55 = scmp.eq.s32.totalorder %s13, 1
      %p56 = por %p54, %p55
      %p57 = scmp.ne.s32.totalorder %s49, %s52
      %p58 = scmp.eq.s32.totalorder %s13, 0
      %p59 = por %p57, %p58
      %p60 = scmp.ne.s32.totalorder %s49, %s52
      %p61 = scmp.eq.s32.totalorder %s18, 1
      %p62 = por %p60, %p61
      %p63 = scmp.ne.s32.totalorder %s52, %s53
      %p64 = scmp.eq.s32.totalorder %s18, 0
      %p65 = por %p63, %p64
      %p66 = scmp.ne.s32.totalorder %s52, %s53
      %p67 = scmp.eq.s32.totalorder %s19, 1
      %p68 = por %p66, %p67
      %p70 = scmp.ne.s32.totalorder %s53, %s69
      %p71 = scmp.eq.s32.totalorder %s19, 0
      %p72 = por %p70, %p71
      %p73 = scmp.le.s32.totalorder 1, %s13
      %p74 = scmp.lt.s32.totalorder %s13, 3
      %p75 = pnand %p73, %p74
      %p76 = pneg %p75
      // Predicated region
      $region9: #{tpu_custom_call.1} parent=5 // pred_check
        _
      $region10: #{tpu_custom_call.1} parent=5 // pred_check_branch
        %78 = sbr.rel (%p75) target = $region12
      $region11: #{tpu_custom_call.1} parent=5 // pred_region
        %s79 = ssub.s32 %s13, 1
      $region12: #{tpu_custom_call.1} parent=5 // pred_fallthru
        _
      %p80 = scmp.lt.s32.totalorder %s13, 2
      // Predicated region
      $region13: #{tpu_custom_call.1} parent=5 // pred_check
        %p81 = pneg %p80
      $region14: #{tpu_custom_call.1} parent=5 // pred_check_branch
        %83 = sbr.rel (%p81) target = $region16
      $region15: #{tpu_custom_call.1} parent=5 // pred_region
        // Predicated region
        $region17: #{tpu_custom_call.1} parent=15 // pred_check
          %p84 = pneg %p33
        $region18: #{tpu_custom_call.1} parent=15 // pred_check_branch
          %86 = sbr.rel (%p84) target = $region20
        $region19: #{tpu_custom_call.1} parent=15 // pred_region
          %s87 = sand.u32 %s23, 1
          %s88 = scalar_lea.sflag [#allocation3], %s87
          %s89 = sand.u32 %s23, 1
          %s90 = smul.addr %s89, 8
          %s91 = scalar_lea.vmem [#allocation2], %s90
          %s93 = ssub.s32 128, 128
          %94 = vsyncadd %s88, %s93
          %s95 = smul.addr %s13, 2
          %s96 = smul.addr %s95, 64
          %s97 = scalar_lea.hbm %s0, %s96
          %s99 = sshll.u32 %s91, 4
          %s100 = int_to_ptr.vmem [resolvable:$true] %s99
          %102 = dma.hbm_to_vmem [thread:$0]  %s97, 128, %s100, %s88
        $region20: #{tpu_custom_call.1} parent=15 // pred_fallthru
          _
      $region16: #{tpu_custom_call.1} parent=5 // pred_fallthru
        _
      %p103 = scmp.le.s32.totalorder 1, %s13
      %p104 = scmp.lt.s32.totalorder %s13, 3
      %p105 = pnand %p103, %p104
      %p106 = pneg %p105
      // Predicated region
      $region21: #{tpu_custom_call.1} parent=5 // pred_check
        _
      $region22: #{tpu_custom_call.1} parent=5 // pred_check_branch
        %108 = sbr.rel (%p105) target = $region24
      $region23: #{tpu_custom_call.1} parent=5 // pred_region
        %s109 = ssub.s32 %s13, 1
        %s110 = sand.u32 %s26, 1
        %s111 = scalar_lea.sflag [#allocation3], %s110
        %s112 = sand.u32 %s26, 1
        %s113 = smul.addr %s112, 8
        %s114 = scalar_lea.vmem [#allocation2], %s113
        // Predicated region
        $region25: #{tpu_custom_call.1} parent=23 // pred_check
          %p115 = pneg %p39
        $region26: #{tpu_custom_call.1} parent=23 // pred_check_branch
          %117 = sbr.rel (%p115) target = $region28
        $region27: #{tpu_custom_call.1} parent=23 // pred_region
          %118 = dma.done %s111, 128
        $region28: #{tpu_custom_call.1} parent=23 // pred_fallthru
          _
        %s119 = sand.u32 %s26, 1
        %s120 = scalar_lea.sflag [#allocation3], %s119
        %s121 = sand.u32 %s26, 1
        %s122 = smul.addr %s121, 8
        %s123 = scalar_lea.vmem [#allocation2], %s122
        %p124 = pneg %p39
        %p125 = pneg %p36
        %p126 = pneg %p65
        %p127 = pneg %p62
        %s128 = sand.u32 %s52, 1
        %s129 = scalar_lea.sflag [#allocation4], %s128
        %s130 = sand.u32 %s52, 1
        %s131 = smul.addr %s130, 2
        %s132 = scalar_lea.vmem [#allocation5], %s131
        %v133 = vld [vmem:[%s114] sm:$0xff]
        %v135 = vcombine.high %v133, %v133
        %vm137 = vcmask 1043456
        %v138 = vsel %vm137, %v133, 0.0
        %v139 = vsel %vm137, %v135, 0.0
        %v140 = vadd.f32 %v138, %v139
        %141 = vadd.xlane.f32.xlu0 %v140
        %v142 = vpop.xlane.xlu0 %141
        %v145 = vunpack.c.l.s4 839922192
        %v146 = vunpack.c.0.s8 %v145
        %v147 = vlaneseq
        %v148 = vshrl.u32 %v147, 7
        %v149 = vsub.s32 %v146, %v148
        %v150 = vrot.slane %v142, %v149
        %v152 = vmul.f32 %v133, %v150
        %v154 = vcombine.high %v152, %v152
        %v156 = vsel %vm137, %v152, 0.0
        %v157 = vrot.slane %v156, 4
        %v158 = vadd.f32 %v156, %v157
        %v159 = vrot.slane %v158, 2
        %v160 = vadd.f32 %v158, %v159
        %v161 = vrot.slane %v160, 1
        %v162 = vadd.f32 %v160, %v161
        %v163 = vsel %vm137, %v154, 0.0
        %v164 = vrot.slane %v163, 4
        %v165 = vadd.f32 %v163, %v164
        %v166 = vrot.slane %v165, 2
        %v167 = vadd.f32 %v165, %v166
        %v168 = vrot.slane %v167, 1
        %v169 = vadd.f32 %v167, %v168
        %v170 = vadd.f32 %v162, 0.0
        %v171 = vadd.f32 %v169, 0.0
        %v172 = vmul.f32 %v170, 0.0009765625
        %v173 = vmul.f32 %v171, 0.0009765625
        %v176 = vcombine.low %v172, %v173
        %v178 = vunpack.c.l.s4 1966171168
        %v179 = vunpack.c.0.s8 %v178
        %v180 = vlaneseq
        %v181 = vshrl.u32 %v180, 7
        %v182 = vsub.s32 %v179, %v181
        %v183 = vrot.slane %v176, %v182
        %v185 = vunpack.c.l.s4 1966171168
        %v186 = vunpack.c.0.s8 %v185
        %v187 = vlaneseq
        %v188 = vshrl.u32 %v187, 7
        %v189 = vsub.s32 %v186, %v188
        %v190 = vrot.slane %v183, %v189
        %v192 = vlaneseq
        %vm193 = vcmp.ge.s32.totalorder %v192, 0
        %vm194 = vcmp.lt.s32.totalorder %v192, 256
        %vm195 = vmand %vm193, %vm194
        %196 = vst.msk [vmem:[%s132] sm:$0x3] %vm195, %v190
        %s197 = sand.u32 %s52, 1
        %s198 = scalar_lea.sflag [#allocation4], %s197
        %s199 = sand.u32 %s52, 1
        %s200 = smul.addr %s199, 2
        %s201 = scalar_lea.vmem [#allocation5], %s200
        // Predicated region
        $region29: #{tpu_custom_call.1} parent=23 // pred_check
          %p202 = pneg %p62
        $region30: #{tpu_custom_call.1} parent=23 // pred_check_branch
          %204 = sbr.rel (%p202) target = $region32
        $region31: #{tpu_custom_call.1} parent=23 // pred_region
          %s206 = ssub.s32 32, 32
          %207 = vsyncadd %s198, %s206
          %s208 = smul.addr %s18, 2
          %s209 = smul.addr %s208, 16
          %s210 = scalar_lea.hbm %s1, %s209
          %s212 = sshll.u32 %s201, 4
          %s213 = int_to_ptr.vmem [resolvable:$true] %s212
          %215 = dma.vmem_to_hbm [thread:$0]  %s213, 32, %s210, %s198
        $region32: #{tpu_custom_call.1} parent=23 // pred_fallthru
          _
      $region24: #{tpu_custom_call.1} parent=5 // pred_fallthru
        _
      %p216 = scmp.le.s32.totalorder 2, %s13
      // Predicated region
      $region33: #{tpu_custom_call.1} parent=5 // pred_check
        %p217 = pneg %p216
      $region34: #{tpu_custom_call.1} parent=5 // pred_check_branch
        %219 = sbr.rel (%p217) target = $region36
      $region35: #{tpu_custom_call.1} parent=5 // pred_region
        %s220 = ssub.s32 %s13, 2
        // Predicated region
        $region37: #{tpu_custom_call.1} parent=35 // pred_check
          %p221 = pneg %p68
        $region38: #{tpu_custom_call.1} parent=35 // pred_check_branch
          %223 = sbr.rel (%p221) target = $region40
        $region39: #{tpu_custom_call.1} parent=35 // pred_region
          %s224 = sand.u32 %s53, 1
          %s225 = scalar_lea.sflag [#allocation4], %s224
          %s226 = sand.u32 %s53, 1
          %s227 = smul.addr %s226, 2
          %s228 = scalar_lea.vmem [#allocation5], %s227
          %229 = dma.done %s225, 32
        $region40: #{tpu_custom_call.1} parent=35 // pred_fallthru
          _
      $region36: #{tpu_custom_call.1} parent=5 // pred_fallthru
        _
    $region6: #{tpu_custom_call.1} parent=1 // loop_footer
      %s17 = sadd.s32 1, %s13
    $region7: #{tpu_custom_call.1} parent=1 // loop_footer_branch
      %12 = sbr.rel target = $region3
    $region8: #{tpu_custom_call.1} parent=1 // loop_exit
      _
    %230 = vsyncpa [#allocation3], 1
    %s231 = scalar_lea.sflag [#allocation3], 1
    %232 = vsyncpa %s231, 1
    %233 = vsyncpa [#allocation4], 1
    %s234 = scalar_lea.sflag [#allocation4], 1
    %235 = vsyncpa %s234, 1

</llo_original>
